<compile_context>
chip_gen: v6e
topology: v6e:2x2x1
jax: 0.10.0
libtpu: 0.0.40
codegen_flags: <defaults>
</compile_context>

<pallas_src>
import functools

import jax
import jax.numpy as jnp
from jax.experimental import pallas as pl
from jax.experimental.pallas import tpu as pltpu

_LANES = 128
_VMEM_BLOCK_BUDGET = 4 * 1024 * 1024   # per-step input block bytes (pipeline double-buffers)
_MAX_TILE_SAMPLES = 4 * _LANES         # cap keeps the (B,1)->(1,B) relayout helper cheap


def _round_up(x, m):
    return (x + m - 1) // m * m


def _pick_tile(n, c_pad, itemsize):
    """Pick samples-per-grid-step B and padded batch size N_pad."""
    if n <= _LANES:
        # Single grid step; full-dim blocks are always (8,128)-legal.
        return n, n
    by_vmem = _VMEM_BLOCK_BUDGET // (c_pad * itemsize * _LANES)
    by_par = pl.cdiv(n, 2 * _LANES)          # leave >= 2 tiles for v7x's 2 TCs
    units = max(1, min(by_vmem, by_par, _MAX_TILE_SAMPLES // _LANES))
    b = units * _LANES                       # multiple of 128 -> (1, B) out block legal
    return b, _round_up(n, b)


def _ce_loss_kernel(t_ref, x_ref, o_ref, *, num_classes):
    # t_ref: VMEM int32[B, 1]     -- class index per sample in this tile
    # x_ref: VMEM dtype[B, C_pad] -- logits tile (class dim zero-padded to 128*k)
    # o_ref: VMEM f32[1, B]       -- per-sample losses (lane-dense)
    x = x_ref[...].astype(jnp.float32)                 # (B, C_pad), VPU cast
    b, c_pad = x.shape

    cls = jax.lax.broadcasted_iota(jnp.int32, (b, c_pad), 1)
    x_m = jnp.where(cls < num_classes, x, -jnp.inf)    # mask padded class lanes

    # Stable per-sample logsumexp (row-softmax reduction pattern).
    m = jnp.max(x_m, axis=1, keepdims=True)            # (B, 1)
    s = jnp.sum(jnp.exp(x_m - m), axis=1, keepdims=True)
    lse = m + jnp.log(s)                               # (B, 1)
    # TODO(synk): a sample whose logits are all -inf yields NaN here; not guarded.

    # Target gather: select-based masked reduce over the slab already in vregs
    # (vectorizes across B; no second VMEM load, no OOB dynamic slice; an
    # out-of-range target simply contributes 0, i.e. loss == logsumexp).
    t = t_ref[...]                                     # (B, 1) int32
    tgt = jnp.sum(jnp.where(cls == t, x, 0.0), axis=1, keepdims=True)

    loss = lse - tgt                                   # (B, 1)

    # (B,1) -> (1,B) lane-dense store, in 128-wide groups:
    #   out[0, k*G + j] = sum_i [i == j] * loss_group[i]
    # (select + sublane reduce; avoids a generic sublane->lane reshape).
    g = b if b <= _LANES else _LANES                   # b is a multiple of g by construction
    r_i = jax.lax.broadcasted_iota(jnp.int32, (g, g), 0)
    c_i = jax.lax.broadcasted_iota(jnp.int32, (g, g), 1)
    eye = r_i == c_i
    for k in range(b // g):
        blk = loss[k * g:(k + 1) * g, :]               # (g, 1), static slice
        o_ref[:, k * g:(k + 1) * g] = jnp.sum(
            jnp.where(eye, blk, 0.0), axis=0, keepdims=True)


def no_batch_loss_batched(values, targets):
    """CrossEntropy loss with NoBatchLoss semantics over a batch of samples.

    values:  (N, ...) logits in their native dtype (each sample flattened to C).
    targets: (N,) integer class indices.
    returns: (N,) float32 losses.
    """
    n = values.shape[0]
    flat = jnp.reshape(values, (n, -1))                # glue: value.view(1, -1) per sample
    c = flat.shape[1]
    c_pad = pl.cdiv(c, _LANES) * _LANES
    itemsize = jnp.dtype(flat.dtype).itemsize
    b, n_pad = _pick_tile(n, c_pad, itemsize)

    if (n_pad, c_pad) != (n, c):
        # Zero pad; padded class lanes are masked to -inf in-kernel and padded
        # batch rows are sliced off below, so results never depend on pad data.
        flat = jnp.pad(flat, ((0, n_pad - n), (0, c_pad - c)))
    targets = jnp.asarray(targets, jnp.int32).reshape(n)
    if n_pad != n:
        targets = jnp.pad(targets, (0, n_pad - n))
    targets2d = targets.reshape(n_pad, 1)

    cost = pl.CostEstimate(                            # real (unpadded) traffic
        flops=int(6 * n * c),
        transcendentals=int(n * c + n),
        bytes_accessed=int(n * c * itemsize + 4 * n + 4 * n),
    )

    out = pl.pallas_call(
        functools.partial(_ce_loss_kernel, num_classes=c),
        out_shape=jax.ShapeDtypeStruct((1, n_pad), jnp.float32),
        grid=(n_pad // b,),
        in_specs=[
            pl.BlockSpec((b, 1), lambda i: (i, 0)),        # targets (blocked VMEM)
            pl.BlockSpec((b, c_pad), lambda i: (i, 0)),    # logits tile
        ],
        out_specs=pl.BlockSpec((1, b), lambda i: (0, i)),  # lane-dense losses
        compiler_params=pltpu.CompilerParams(
            dimension_semantics=("parallel",)),
        cost_estimate=cost,
    )(targets2d, flat)

    return out[0, :n]


def no_batch_loss(value, target):
    """Equivalent of NoBatchLoss(nn.CrossEntropyLoss())(value, target)."""
    losses = no_batch_loss_batched(value[None], jnp.asarray([target], jnp.int32))
    return losses[0]   # 0-d scalar, matching PyTorch's 0-dim output


if __name__ == "__main__":
    key = jax.random.PRNGKey(0)

    # 1) Single-sample path: the literal NoBatchLoss forward (value.view(1,-1), int target).
    value = jax.random.normal(key, (4, 8), dtype=jnp.float32)   # tree-LSTM head output, C=32
    target = 5
    loss = no_batch_loss(value, target)
    jax.block_until_ready(loss)
    logits = jnp.reshape(value, (1, -1))
    ref = jax.nn.logsumexp(logits, axis=-1)[0] - logits[0, target]
    assert jnp.allclose(loss, ref, rtol=1e-5, atol=1e-5), (loss, ref)

    # 2) Batched single-tile path (one grid step for the whole batch).
    k1, k2 = jax.random.split(key)
    values = jax.random.normal(k1, (8, 4, 8), dtype=jnp.float32)   # 8 samples, C=32
    targets = jax.random.randint(k2, (8,), 0, 32)
    losses = no_batch_loss_batched(values, targets)
    jax.block_until_ready(losses)
    flat = values.reshape(8, -1)
    ref_b = (jax.nn.logsumexp(flat, axis=-1)
             - jnp.take_along_axis(flat, targets[:, None], axis=1)[:, 0])
    assert jnp.allclose(losses, ref_b, rtol=1e-5, atol=1e-5), (losses, ref_b)

    # 3) Multi-tile path (exercises 128-multiple batch tiles, padded rows, parallel grid).
    k3, k4 = jax.random.split(k1)
    values_l = jax.random.normal(k3, (260, 4, 8), dtype=jnp.float32)
    targets_l = jax.random.randint(k4, (260,), 0, 32)
    losses_l = no_batch_loss_batched(values_l, targets_l)
    jax.block_until_ready(losses_l)
    flat_l = values_l.reshape(260, -1)
    ref_l = (jax.nn.logsumexp(flat_l, axis=-1)
             - jnp.take_along_axis(flat_l, targets_l[:, None], axis=1)[:, 0])
    assert jnp.allclose(losses_l, ref_l, rtol=1e-5, atol=1e-5), (losses_l, ref_l)

    # 4) Native-dtype (bf16) path: no wrapper cast, kernel casts on the VPU.
    values_bf16 = values.astype(jnp.bfloat16)
    losses_bf16 = no_batch_loss_batched(values_bf16, targets)
    jax.block_until_ready(losses_bf16)
    flat_bf = values_bf16.astype(jnp.float32).reshape(8, -1)
    ref_bf = (jax.nn.logsumexp(flat_bf, axis=-1)
              - jnp.take_along_axis(flat_bf, targets[:, None], axis=1)[:, 0])
    assert jnp.allclose(losses_bf16, ref_bf, rtol=1e-4, atol=1e-4), (losses_bf16, ref_bf)

    print("KERNEL_OK")
</pallas_src>

<mosaic_0001>
module attributes {stable_mosaic.version = 11 : i64} {
  func.func @_ce_loss_kernel(%arg0: i32, %arg1: memref<1x1xi32, #tpu.memory_space<vmem>>, %arg2: memref<1x128xf32, #tpu.memory_space<vmem>>, %arg3: memref<1x1xf32, #tpu.memory_space<vmem>>) attributes {dimension_semantics = [#tpu.dimension_semantics<parallel>], iteration_bounds = array<i64: 1>, scalar_prefetch = 0 : i64, scratch_operands = 0 : i64, tpu.core_type = #tpu.core_type<tc>, window_params = [{transform_indices = @transform_0, window_bounds = array<i64: 1, 1>}, {transform_indices = @transform_1, window_bounds = array<i64: 1, 128>}, {transform_indices = @transform_2, window_bounds = array<i64: 1, 1>}]} {
    %c0 = arith.constant 0 : index
    %c0_0 = arith.constant 0 : index
    %0 = vector.load %arg2[%c0, %c0_0] : memref<1x128xf32, #tpu.memory_space<vmem>>, vector<1x128xf32>
    %1 = tpu.iota {dimensions = array<i32: 1>} : vector<1x128xi32>
    %c32_i32 = arith.constant 32 : i32
    %2 = vector.broadcast %c32_i32 : i32 to vector<1x128xi32>
    %3 = arith.cmpi slt, %1, %2 : vector<1x128xi32>
    %cst = arith.constant 0xFF800000 : f32
    %4 = vector.broadcast %cst : f32 to vector<1x128xf32>
    %5 = arith.select %3, %0, %4 : vector<1x128xi1>, vector<1x128xf32>
    %cst_1 = arith.constant dense<0xFF800000> : vector<1xf32>
    %6 = vector.multi_reduction <maximumf>, %5, %cst_1 [1] : vector<1x128xf32> to vector<1xf32>
    %7 = vector.shape_cast %6 : vector<1xf32> to vector<1x1xf32>
    %8 = vector.broadcast %7 : vector<1x1xf32> to vector<1x128xf32>
    %9 = arith.subf %5, %8 : vector<1x128xf32>
    %10 = math.exp %9 : vector<1x128xf32>
    %cst_2 = arith.constant dense<0.000000e+00> : vector<1xf32>
    %11 = vector.multi_reduction <add>, %10, %cst_2 [1] : vector<1x128xf32> to vector<1xf32>
    %12 = vector.shape_cast %11 : vector<1xf32> to vector<1x1xf32>
    %13 = math.log %12 : vector<1x1xf32>
    %14 = arith.addf %7, %13 : vector<1x1xf32>
    %c0_3 = arith.constant 0 : index
    %c0_4 = arith.constant 0 : index
    %15 = vector.load %arg1[%c0_3, %c0_4] : memref<1x1xi32, #tpu.memory_space<vmem>>, vector<1x1xi32>
    %16 = vector.broadcast %15 : vector<1x1xi32> to vector<1x128xi32>
    %17 = arith.cmpi eq, %1, %16 : vector<1x128xi32>
    %cst_5 = arith.constant 0.000000e+00 : f32
    %18 = vector.broadcast %cst_5 : f32 to vector<1x128xf32>
    %19 = arith.select %17, %0, %18 : vector<1x128xi1>, vector<1x128xf32>
    %cst_6 = arith.constant dense<0.000000e+00> : vector<1xf32>
    %20 = vector.multi_reduction <add>, %19, %cst_6 [1] : vector<1x128xf32> to vector<1xf32>
    %21 = vector.shape_cast %20 : vector<1xf32> to vector<1x1xf32>
    %22 = arith.subf %14, %21 : vector<1x1xf32>
    %23 = tpu.iota {dimensions = array<i32: 0>} : vector<1x1xi32>
    %24 = tpu.iota {dimensions = array<i32: 1>} : vector<1x1xi32>
    %25 = arith.cmpi eq, %23, %24 : vector<1x1xi32>
    %cst_7 = arith.constant 0.000000e+00 : f32
    %26 = vector.broadcast %cst_7 : f32 to vector<1x1xf32>
    %27 = arith.select %25, %22, %26 : vector<1x1xi1>, vector<1x1xf32>
    %cst_8 = arith.constant dense<0.000000e+00> : vector<1xf32>
    %28 = vector.multi_reduction <add>, %27, %cst_8 [0] : vector<1x1xf32> to vector<1xf32>
    %29 = vector.shape_cast %28 : vector<1xf32> to vector<1x1xf32>
    %c0_9 = arith.constant 0 : index
    %c0_10 = arith.constant 0 : index
    %30 = vector.load %arg3[%c0_9, %c0_10] : memref<1x1xf32, #tpu.memory_space<vmem>>, vector<1x1xf32>
    tpu.vector_store %arg3[%c0_9, %c0_10], %29 {strides = array<i32>} : memref<1x1xf32, #tpu.memory_space<vmem>>, vector<1x1xf32>,
    return
  }
  func.func @transform_0(%arg0: i32) -> (i32, i32) {
    %c0_i32 = arith.constant 0 : i32
    %c0_i32_0 = arith.constant 0 : i32
    return %arg0, %c0_i32 : i32, i32
  }
  func.func @transform_1(%arg0: i32) -> (i32, i32) {
    %c0_i32 = arith.constant 0 : i32
    %c0_i32_0 = arith.constant 0 : i32
    return %arg0, %c0_i32 : i32, i32
  }
  func.func @transform_2(%arg0: i32) -> (i32, i32) {
    %c0_i32 = arith.constant 0 : i32
    %c0_i32_0 = arith.constant 0 : i32
    return %c0_i32, %arg0 : i32, i32
  }
}

</mosaic_0001>

<llo_original>
// kernel: tpu_custom_call.1
$region0: #{tpu_custom_call.1}
  #allocation0 [shape = 'u32[]', space=smem, size = 0x4, offset = 0x4, fixed_abs, tag = 'smem constant byte address 0x4 - core index']
  #allocation1 [shape = 'u32[144,128]{1,0:T(1,128)}', space=vmem, size = 0x12000, scoped, tag = 'internal scratch']
  #allocation2 [shape = 's32[1,1]{1,0:T(1,128)S(1)}', space=vmem, size = 0x200, scoped, tag = 'scoped memory for tpu_custom_call.1']
  %s0 = inlined_call_operand.<no memory space> [shape: s32[1,1], index: 0, kind: input, shape index: {}]
  %s1 = inlined_call_operand.vmem [shape: f32[1,128], index: 1, kind: input, shape index: {}]
  %s2 = inlined_call_operand.hbm [shape: f32[1,1], index: 2, kind: output, shape index: {}]
  %s3 = sld [smem:[#allocation0]]
  $region18: #{tpu_custom_call.1} parent=0
    _
  %s5 = ssub.s32 1, %s3
  %s6 = scalar_select 0, %s5, %s3
  %v7 = vstv %s0
  %8 = vst [vmem:[#allocation2] sm:$0x1] %v7
  $region1: #{tpu_custom_call.1} parent=0
    #allocation3 [shape = 'u8[512]{0}', space=vmem, size = 0x400, scoped, tag = 'output window, operand 0, single buffered']
    #allocation4 [shape = 's32[1]{0}', space=sflag, size = 0x4, scoped, tag = 'scoped memory for tpu_custom_call.1']
    %9 = vsyncpa [#allocation4], 0
    // Predicated region
    $region2: #{tpu_custom_call.1} parent=1 // pred_check
      _
    $region3: #{tpu_custom_call.1} parent=1 // pred_check_branch
      %11 = sbr.rel (0) target = $region5
    $region4: #{tpu_custom_call.1} parent=1 // pred_region
      _
    $region5: #{tpu_custom_call.1} parent=1 // pred_fallthru
      _
    // Predicated region
    $region6: #{tpu_custom_call.1} parent=1 // pred_check
      _
    $region7: #{tpu_custom_call.1} parent=1 // pred_check_branch
      %13 = sbr.rel (0) target = $region9
    $region8: #{tpu_custom_call.1} parent=1 // pred_region
      _
    $region9: #{tpu_custom_call.1} parent=1 // pred_fallthru
      _
    %v14 = vld [vmem:[%s1] sm:$0x1]
    %v15 = vlaneseq
    %v16 = vand.u32 %v15, 127
    %vm17 = vcmp.lt.s32.totalorder %v16, 32
    %v18 = vsel %vm17, %v14, -inf
    %vm19 = vcmask 1040384
    %v20 = vsel %vm19, %v18, -inf
    %21 = vmax.xlane.f32.xlu0 %v20
    %v22 = vpop.xlane.xlu0 %21
    %v23 = vsub.f32 %v18, %v22
    %v24 = vmul.f32 %v23, 1.442695
    %v25 = vpow.pop %v24
    %v26 = vsel %vm19, %v25, 0.0
    %27 = vadd.xlane.f32.xlu0 %v26
    %v28 = vpop.xlane.xlu0 %27
    %v29 = vlog2.pop %v28
    %v30 = vmul.f32 %v29, 0.6931472
    %v31 = vadd.f32 %v22, %v30
    %v32 = vld [vmem:[#allocation2] sm:$0x1]
    %33 = vset.pattern.permute.xlu0 0
    %34 = vperm.xlu0 %33, %v32
    %v35 = vpop.permute.xlu0 %34
    %v36 = vlaneseq
    %v37 = vshrl.u32 %v36, 7
    %v38 = vsub.s32 0, %v37
    %v39 = vrot.slane %v35, %v38
    %vm40 = vcmp.eq.s32.totalorder %v16, %v39
    %v41 = vsel %vm40, %v14, 0.0
    %v42 = vsel %vm19, %v41, 0.0
    %43 = vadd.xlane.f32.xlu0 %v42
    %v44 = vpop.xlane.xlu0 %43
    %v45 = vsub.f32 %v31, %v44
    %v46 = vlaneseq
    %v47 = vshrl.u32 %v46, 7
    %vm48 = vcmp.eq.s32.totalorder %v47, %v16
    %v49 = vsel %vm48, %v45, 0.0
    %v50 = vadd.f32 %v49, 0.0
    %vm51 = vcmask 0
    %52 = vst.msk [vmem:[#allocation3] sm:$0x1] %vm51, %v50
    // Predicated region
    $region10: #{tpu_custom_call.1} parent=1 // pred_check
      _
    $region11: #{tpu_custom_call.1} parent=1 // pred_check_branch
      %54 = sbr.rel (0) target = $region13
    $region12: #{tpu_custom_call.1} parent=1 // pred_region
      %s56 = ssub.s32 16, 16
      %57 = vsyncadd [#allocation4], %s56
      %s59 = sshll.u32 [#allocation3], 4
      %s60 = int_to_ptr.vmem [resolvable:$true] %s59
      %62 = dma.vmem_to_hbm [thread:$0]  %s60, 16, %s2, [#allocation4]
    $region13: #{tpu_custom_call.1} parent=1 // pred_fallthru
      _
    // Predicated region
    $region14: #{tpu_custom_call.1} parent=1 // pred_check
      _
    $region15: #{tpu_custom_call.1} parent=1 // pred_check_branch
      %64 = sbr.rel (0) target = $region17
    $region16: #{tpu_custom_call.1} parent=1 // pred_region
      %65 = dma.done [#allocation4], 16
    $region17: #{tpu_custom_call.1} parent=1 // pred_fallthru
      _
    %66 = vsyncpa [#allocation4], 1

</llo_original>
